<compile_context>
chip_gen: v7x
topology: tpu7x:2x2x1
jax: 0.10.0
libtpu: 0.0.40
codegen_flags: <defaults>
</compile_context>

<pallas_src>
import functools

import jax
import jax.numpy as jnp
from jax import lax
from jax.experimental import pallas as pl
from jax.experimental.pallas import tpu as pltpu


# ----------------------------------------------------------------------------
# Fused kernel: conv (3 accumulated MXU dots) + BN + ReLU (+ AvgPool 2x2 / s1)
# ----------------------------------------------------------------------------
def _block_kernel(pw_ref, w_ref, scale_ref, bias_ref, o_ref, *, H, W, kh, pool):
    # pw_ref:    ((H+2)*W, kw*Cin)   bf16  horizontally pre-gathered rows
    # w_ref:     (kh, kw*Cin, Cout)  bf16  conv weight, one slab per vertical tap
    # scale_ref: (1, Cout)           f32   gamma / sqrt(var + eps)
    # bias_ref:  (1, Cout)           f32   beta + (conv_b - mean) * scale
    # o_ref:     (H-1, W-1, Cout) if pool else (H, W, Cout)
    Cout = w_ref.shape[-1]
    HW = H * W

    acc = jnp.zeros((HW, Cout), jnp.float32)
    for di in range(kh):                       # 3 vertical taps, static loop
        a = pw_ref[di * W:di * W + HW, :]      # aligned sublane slice, (H*W, kw*Cin)
        acc = acc + jnp.dot(a, w_ref[di], preferred_element_type=jnp.float32)

    # Fused BatchNorm (inference affine) + ReLU epilogue, f32.
    y = jnp.maximum(acc * scale_ref[...] + bias_ref[...], 0.0)
    # TODO(synk): training-mode Dropout2d (per-channel Bernoulli mask) not
    # implemented; identity in eval mode.

    y = y.reshape(H, W, Cout)                  # tile-aligned shape cast (lane dim kept)
    if pool:
        s = (y[:-1, :-1, :] + y[1:, :-1, :] + y[:-1, 1:, :] + y[1:, 1:, :])
        o_ref[...] = (s * 0.25).astype(o_ref.dtype)
    else:
        o_ref[...] = y.astype(o_ref.dtype)


def fused_block(pw, w3, scale, bias, *, H, W, pool):
    N, HP2W, K = pw.shape          # ((H+2)*W, kw*Cin) per image
    kh, _, Cout = w3.shape
    Ho, Wo = (H - 1, W - 1) if pool else (H, W)
    kernel = functools.partial(_block_kernel, H=H, W=W, kh=kh, pool=pool)
    return pl.pallas_call(
        kernel,
        out_shape=jax.ShapeDtypeStruct((N, Ho, Wo, Cout), jnp.float32),
        grid_spec=pltpu.PrefetchScalarGridSpec(
            num_scalar_prefetch=0,
            grid=(N,),
            in_specs=[
                pl.BlockSpec((None, HP2W, K), lambda n: (n, 0, 0)),
                pl.BlockSpec((kh, K, Cout), lambda n: (0, 0, 0)),
                pl.BlockSpec((1, Cout), lambda n: (0, 0)),
                pl.BlockSpec((1, Cout), lambda n: (0, 0)),
            ],
            out_specs=pl.BlockSpec((None, Ho, Wo, Cout), lambda n: (n, 0, 0, 0)),
        ),
        compiler_params=pltpu.CompilerParams(
            dimension_semantics=("parallel",)),
    )(pw, w3, scale, bias)


# ----------------------------------------------------------------------------
# Full Block forward (NCHW input / output, to match the PyTorch module)
# ----------------------------------------------------------------------------
@functools.partial(jax.jit, static_argnames=("is_pool",))
def block_forward(x_nchw, conv_w, conv_b, bn_gamma, bn_beta, bn_mean, bn_var,
                  *, is_pool=True, eps=1e-5):
    N, Cin, H, W = x_nchw.shape
    Cout, _, kh, kw = conv_w.shape

    # NCHW -> NHWC, pad spatially (pad=1, stride=1, 3x3).
    x = jnp.transpose(x_nchw, (0, 2, 3, 1))
    xp = jnp.pad(x, ((0, 0), (1, 1), (1, 1), (0, 0)))        # (N, H+2, W+2, Cin)

    # Horizontal-only patch gather: pwm[n, h'*W + w, dj*Cin + ci] = xp[n, h', w+dj, ci]
    # (kw*Cin = 9 wide, bf16).  The vertical taps stay implicit: tap di is the
    # contiguous row block [di*W, di*W + H*W) inside the kernel.
    pwm = jnp.concatenate([xp[:, :, dj:dj + W, :] for dj in range(kw)], axis=-1)
    pwm = pwm.reshape(N, (H + 2) * W, kw * Cin).astype(jnp.bfloat16)

    # Weight [Cout, Cin, kh, kw] -> [kh, kw*Cin, Cout], bf16 for the MXU.
    w3 = jnp.transpose(conv_w, (2, 3, 1, 0)).reshape(kh, kw * Cin, Cout)
    w3 = w3.astype(jnp.bfloat16)

    # Fold conv bias + BatchNorm (inference) into a single f32 scale/bias.
    scale = bn_gamma / jnp.sqrt(bn_var + eps)                 # [Cout]
    bias = (conv_b - bn_mean) * scale + bn_beta               # [Cout]
    scale2d = scale.reshape(1, Cout).astype(jnp.float32)
    bias2d = bias.reshape(1, Cout).astype(jnp.float32)

    y = fused_block(pwm, w3, scale2d, bias2d, H=H, W=W, pool=is_pool)  # NHWC out

    # NHWC -> NCHW to match the PyTorch module's output convention.
    return jnp.transpose(y, (0, 3, 1, 2))


# ----------------------------------------------------------------------------
# Reference (pure JAX, f32) for a sanity check
# ----------------------------------------------------------------------------
def block_reference(x_nchw, conv_w, conv_b, bn_gamma, bn_beta, bn_mean, bn_var,
                    eps=1e-5):
    x = jnp.transpose(x_nchw, (0, 2, 3, 1))
    w_hwio = jnp.transpose(conv_w, (2, 3, 1, 0))
    y = lax.conv_general_dilated(
        x, w_hwio, window_strides=(1, 1), padding=((1, 1), (1, 1)),
        dimension_numbers=("NHWC", "HWIO", "NHWC"))
    y = y + conv_b.reshape(1, 1, 1, -1)
    scale = bn_gamma / jnp.sqrt(bn_var + eps)
    y = (y - bn_mean.reshape(1, 1, 1, -1)) * scale.reshape(1, 1, 1, -1) \
        + bn_beta.reshape(1, 1, 1, -1)
    y = jnp.maximum(y, 0.0)
    y = (y[:, :-1, :-1, :] + y[:, 1:, :-1, :] +
         y[:, :-1, 1:, :] + y[:, 1:, 1:, :]) * 0.25
    return jnp.transpose(y, (0, 3, 1, 2))


if __name__ == "__main__":
    # Small shapes consistent with the module defaults: Cin=3, Cout=128.
    N, Cin, H, W = 2, 3, 16, 16
    Cout, kh, kw = 128, 3, 3

    key = jax.random.PRNGKey(0)
    k_x, k_w, k_b = jax.random.split(key, 3)

    x = jax.random.normal(k_x, (N, Cin, H, W), dtype=jnp.float32)
    conv_w = 0.1 * jax.random.normal(k_w, (Cout, Cin, kh, kw), dtype=jnp.float32)
    conv_b = 0.05 * jax.random.normal(k_b, (Cout,), dtype=jnp.float32)

    # Deterministic BatchNorm parameters / running statistics.
    bn_gamma = 1.0 + 0.01 * jnp.arange(Cout, dtype=jnp.float32)
    bn_beta = 0.02 * jnp.arange(Cout, dtype=jnp.float32) - 0.5
    bn_mean = 0.005 * jnp.arange(Cout, dtype=jnp.float32)
    bn_var = 0.5 + 0.01 * jnp.arange(Cout, dtype=jnp.float32)

    out = block_forward(x, conv_w, conv_b, bn_gamma, bn_beta, bn_mean, bn_var,
                        is_pool=True)
    out = jax.block_until_ready(out)

    ref = block_reference(x, conv_w, conv_b, bn_gamma, bn_beta, bn_mean, bn_var)
    ref = jax.block_until_ready(ref)

    assert out.shape == (N, Cout, H - 1, W - 1), out.shape
    # Tolerance loosened vs. the f32 reference because the matmul inputs are
    # bf16 (f32 accumulation on the MXU).
    assert jnp.allclose(out, ref, atol=5e-2, rtol=5e-2), \
        float(jnp.max(jnp.abs(out - ref)))

    print("KERNEL_OK")
</pallas_src>

<mosaic_0001>
module attributes {stable_mosaic.version = 11 : i64} {
  func.func @_block_kernel(%arg0: i32, %arg1: memref<1x288x9xbf16, #tpu.memory_space<vmem>>, %arg2: memref<3x9x128xbf16, #tpu.memory_space<vmem>>, %arg3: memref<1x128xf32, #tpu.memory_space<vmem>>, %arg4: memref<1x128xf32, #tpu.memory_space<vmem>>, %arg5: memref<1x15x15x128xf32, #tpu.memory_space<vmem>>) attributes {dimension_semantics = [#tpu.dimension_semantics<parallel>], iteration_bounds = array<i64: 2>, scalar_prefetch = 0 : i64, scratch_operands = 0 : i64, tpu.core_type = #tpu.core_type<tc>, window_params = [{transform_indices = @transform_0, window_bounds = array<i64: 1, 288, 9>}, {pipeline_mode = #tpu.pipeline_mode<synchronous>, transform_indices = @transform_1, window_bounds = array<i64: 3, 9, 128>}, {pipeline_mode = #tpu.pipeline_mode<synchronous>, transform_indices = @transform_2, window_bounds = array<i64: 1, 128>}, {pipeline_mode = #tpu.pipeline_mode<synchronous>, transform_indices = @transform_3, window_bounds = array<i64: 1, 128>}, {transform_indices = @transform_4, window_bounds = array<i64: 1, 15, 15, 128>}]} {
    %cst = arith.constant 0.000000e+00 : f32
    %0 = vector.broadcast %cst : f32 to vector<256x128xf32>
    %c0 = arith.constant 0 : index
    %c0_0 = arith.constant 0 : index
    %c0_1 = arith.constant 0 : index
    %1 = vector.load %arg1[%c0, %c0_0, %c0_1] : memref<1x288x9xbf16, #tpu.memory_space<vmem>>, vector<1x256x9xbf16>
    %2 = vector.shape_cast %1 : vector<1x256x9xbf16> to vector<256x9xbf16>
    %c0_2 = arith.constant 0 : index
    %c0_3 = arith.constant 0 : index
    %c0_4 = arith.constant 0 : index
    %3 = vector.load %arg2[%c0_2, %c0_3, %c0_4] : memref<3x9x128xbf16, #tpu.memory_space<vmem>>, vector<1x9x128xbf16>
    %4 = vector.shape_cast %3 : vector<1x9x128xbf16> to vector<9x128xbf16>
    %cst_5 = arith.constant dense<0.000000e+00> : vector<256x128xf32>
    %5 = tpu.matmul %2, %4, %cst_5 {dimension_numbers = #tpu.dot_dimension_numbers<[1], [0], [0], [1], [0, 0, 1, 1], [], []>} : vector<256x9xbf16>, vector<9x128xbf16>, vector<256x128xf32> -> vector<256x128xf32>
    %6 = arith.addf %0, %5 : vector<256x128xf32>
    %c0_6 = arith.constant 0 : index
    %c16 = arith.constant 16 : index
    %c0_7 = arith.constant 0 : index
    %7 = vector.load %arg1[%c0_6, %c16, %c0_7] : memref<1x288x9xbf16, #tpu.memory_space<vmem>>, vector<1x256x9xbf16>
    %8 = vector.shape_cast %7 : vector<1x256x9xbf16> to vector<256x9xbf16>
    %c1 = arith.constant 1 : index
    %c0_8 = arith.constant 0 : index
    %c0_9 = arith.constant 0 : index
    %9 = vector.load %arg2[%c1, %c0_8, %c0_9] : memref<3x9x128xbf16, #tpu.memory_space<vmem>>, vector<1x9x128xbf16>
    %10 = vector.shape_cast %9 : vector<1x9x128xbf16> to vector<9x128xbf16>
    %cst_10 = arith.constant dense<0.000000e+00> : vector<256x128xf32>
    %11 = tpu.matmul %8, %10, %cst_10 {dimension_numbers = #tpu.dot_dimension_numbers<[1], [0], [0], [1], [0, 0, 1, 1], [], []>} : vector<256x9xbf16>, vector<9x128xbf16>, vector<256x128xf32> -> vector<256x128xf32>
    %12 = arith.addf %6, %11 : vector<256x128xf32>
    %c0_11 = arith.constant 0 : index
    %c32 = arith.constant 32 : index
    %c0_12 = arith.constant 0 : index
    %13 = vector.load %arg1[%c0_11, %c32, %c0_12] : memref<1x288x9xbf16, #tpu.memory_space<vmem>>, vector<1x256x9xbf16>
    %14 = vector.shape_cast %13 : vector<1x256x9xbf16> to vector<256x9xbf16>
    %c2 = arith.constant 2 : index
    %c0_13 = arith.constant 0 : index
    %c0_14 = arith.constant 0 : index
    %15 = vector.load %arg2[%c2, %c0_13, %c0_14] : memref<3x9x128xbf16, #tpu.memory_space<vmem>>, vector<1x9x128xbf16>
    %16 = vector.shape_cast %15 : vector<1x9x128xbf16> to vector<9x128xbf16>
    %cst_15 = arith.constant dense<0.000000e+00> : vector<256x128xf32>
    %17 = tpu.matmul %14, %16, %cst_15 {dimension_numbers = #tpu.dot_dimension_numbers<[1], [0], [0], [1], [0, 0, 1, 1], [], []>} : vector<256x9xbf16>, vector<9x128xbf16>, vector<256x128xf32> -> vector<256x128xf32>
    %18 = arith.addf %12, %17 : vector<256x128xf32>
    %c0_16 = arith.constant 0 : index
    %c0_17 = arith.constant 0 : index
    %19 = vector.load %arg3[%c0_16, %c0_17] : memref<1x128xf32, #tpu.memory_space<vmem>>, vector<1x128xf32>
    %20 = vector.broadcast %19 : vector<1x128xf32> to vector<256x128xf32>
    %21 = arith.mulf %18, %20 : vector<256x128xf32>
    %c0_18 = arith.constant 0 : index
    %c0_19 = arith.constant 0 : index
    %22 = vector.load %arg4[%c0_18, %c0_19] : memref<1x128xf32, #tpu.memory_space<vmem>>, vector<1x128xf32>
    %23 = vector.broadcast %22 : vector<1x128xf32> to vector<256x128xf32>
    %24 = arith.addf %21, %23 : vector<256x128xf32>
    %cst_20 = arith.constant 0.000000e+00 : f32
    %25 = vector.broadcast %cst_20 : f32 to vector<256x128xf32>
    %26 = arith.maximumf %24, %25 : vector<256x128xf32>
    %27 = vector.shape_cast %26 : vector<256x128xf32> to vector<16x16x128xf32>
    %28 = vector.extract_strided_slice %27 {offsets = [0, 0, 0], sizes = [15, 15, 128], strides = [1, 1, 1]} : vector<16x16x128xf32> to vector<15x15x128xf32>
    %29 = vector.extract_strided_slice %27 {offsets = [1, 0, 0], sizes = [15, 15, 128], strides = [1, 1, 1]} : vector<16x16x128xf32> to vector<15x15x128xf32>
    %30 = arith.addf %28, %29 : vector<15x15x128xf32>
    %31 = vector.extract_strided_slice %27 {offsets = [0, 1, 0], sizes = [15, 15, 128], strides = [1, 1, 1]} : vector<16x16x128xf32> to vector<15x15x128xf32>
    %32 = arith.addf %30, %31 : vector<15x15x128xf32>
    %33 = vector.extract_strided_slice %27 {offsets = [1, 1, 0], sizes = [15, 15, 128], strides = [1, 1, 1]} : vector<16x16x128xf32> to vector<15x15x128xf32>
    %34 = arith.addf %32, %33 : vector<15x15x128xf32>
    %cst_21 = arith.constant 2.500000e-01 : f32
    %35 = vector.broadcast %cst_21 : f32 to vector<15x15x128xf32>
    %36 = arith.mulf %34, %35 : vector<15x15x128xf32>
    %c0_22 = arith.constant 0 : index
    %c0_23 = arith.constant 0 : index
    %c0_24 = arith.constant 0 : index
    %c0_25 = arith.constant 0 : index
    %37 = vector.load %arg5[%c0_22, %c0_23, %c0_24, %c0_25] : memref<1x15x15x128xf32, #tpu.memory_space<vmem>>, vector<1x15x15x128xf32>
    %38 = vector.shape_cast %37 : vector<1x15x15x128xf32> to vector<15x15x128xf32>
    %39 = vector.shape_cast %36 : vector<15x15x128xf32> to vector<1x15x15x128xf32>
    tpu.vector_store %arg5[%c0_22, %c0_23, %c0_24, %c0_25], %39 {strides = array<i32>} : memref<1x15x15x128xf32, #tpu.memory_space<vmem>>, vector<1x15x15x128xf32>,
    return
  }
  func.func @transform_0(%arg0: i32) -> (i32, i32, i32) {
    %c0_i32 = arith.constant 0 : i32
    %c0_i32_0 = arith.constant 0 : i32
    %c0_i32_1 = arith.constant 0 : i32
    return %arg0, %c0_i32, %c0_i32_0 : i32, i32, i32
  }
  func.func @transform_1(%arg0: i32) -> (i32, i32, i32) {
    %c0_i32 = arith.constant 0 : i32
    %c0_i32_0 = arith.constant 0 : i32
    %c0_i32_1 = arith.constant 0 : i32
    %c0_i32_2 = arith.constant 0 : i32
    return %c0_i32, %c0_i32_0, %c0_i32_1 : i32, i32, i32
  }
  func.func @transform_2(%arg0: i32) -> (i32, i32) {
    %c0_i32 = arith.constant 0 : i32
    %c0_i32_0 = arith.constant 0 : i32
    %c0_i32_1 = arith.constant 0 : i32
    return %c0_i32, %c0_i32_0 : i32, i32
  }
  func.func @transform_3(%arg0: i32) -> (i32, i32) {
    %c0_i32 = arith.constant 0 : i32
    %c0_i32_0 = arith.constant 0 : i32
    %c0_i32_1 = arith.constant 0 : i32
    return %c0_i32, %c0_i32_0 : i32, i32
  }
  func.func @transform_4(%arg0: i32) -> (i32, i32, i32, i32) {
    %c0_i32 = arith.constant 0 : i32
    %c0_i32_0 = arith.constant 0 : i32
    %c0_i32_1 = arith.constant 0 : i32
    %c0_i32_2 = arith.constant 0 : i32
    return %arg0, %c0_i32, %c0_i32_0, %c0_i32_1 : i32, i32, i32, i32
  }
}

</mosaic_0001>

<llo_original>
// kernel: block_forward.1
$region0: #{block_forward.1}
  #allocation0 [shape = 'u32[]', space=smem, size = 0x4, offset = 0x4, fixed_abs, tag = 'smem constant byte address 0x4 - core index']
  #allocation1 [shape = 'u32[144,128]{1,0:T(1,128)}', space=vmem, size = 0x12000, scoped, tag = 'internal scratch']
  %s0 = inlined_call_operand.vmem [shape: bf16[2,288,9], index: 0, kind: input, shape index: {}]
  %s1 = inlined_call_operand.vmem [shape: bf16[3,9,128], index: 1, kind: input, shape index: {}]
  %s2 = inlined_call_operand.vmem [shape: f32[1,128], index: 2, kind: input, shape index: {}]
  %s3 = inlined_call_operand.vmem [shape: f32[1,128], index: 3, kind: input, shape index: {}]
  %s4 = inlined_call_operand.vmem [shape: f32[2,15,15,128], index: 4, kind: output, shape index: {}]
  %s5 = sld [smem:[#allocation0]]
  $region49: #{block_forward.1} parent=0
    _
  %s7 = ssub.s32 1, %s5
  %s8 = scalar_select 0, %s7, %s5
  loop: start=0, step=1, limit=4
  $region2: #{block_forward.1} parent=0 // loop_pre_header
    _
  $region3: #{block_forward.1} parent=0 // loop_header
    %s10 = sphi 0, %s14
    %p11 = scmp.ge.s32.totalorder %s10, 4
    %s20 = sphi 0, %s22
    %s23 = sphi 0, %s20
    %s24 = sphi 0, %s23
    %s40 = sphi 0, %s24
    %s44 = sphi 0, %s44
    %s46 = sphi 0, %s44
    %s47 = sphi 0, %s46
    %s61 = sphi 0, %s47
    %s65 = sphi 0, %s65
    %s67 = sphi 0, %s65
    %s68 = sphi 0, %s67
    %s82 = sphi 0, %s68
    %s86 = sphi 0, %s86
    %s88 = sphi 0, %s86
    %s89 = sphi 0, %s88
    %s103 = sphi 0, %s89
    %s109 = sphi 0, %s111
    %s112 = sphi 0, %s109
    %s113 = sphi 0, %s112
    %s129 = sphi 0, %s113
  $region4: #{block_forward.1} parent=0 // loop_header_branch
    %13 = sbr.rel (%p11) target = $region8
  $region5: #{block_forward.1} parent=0 // loop_body
    %s15 = ssub.s32 %s10, 1
    %s16 = ssub.s32 %s10, 2
    %s17 = sadd.s32 %s10, 1
    %s18 = ssub.s32 %s10, %s17
    %p19 = scmp.eq.s32.totalorder %s18, 0
    %s21 = sadd.s32 %s20, 1
    %s22 = scalar_select %p19, %s20, %s21
    %p25 = pneg %p19
    %p26 = scmp.eq.s32.totalorder %s10, 1
    %p27 = por %p25, %p26
    %p28 = scmp.ne.s32.totalorder %s20, %s23
    %p29 = scmp.eq.s32.totalorder %s10, 0
    %p30 = por %p28, %p29
    %p31 = scmp.ne.s32.totalorder %s20, %s23
    %p32 = scmp.eq.s32.totalorder %s15, 1
    %p33 = por %p31, %p32
    %p34 = scmp.ne.s32.totalorder %s23, %s24
    %p35 = scmp.eq.s32.totalorder %s15, 0
    %p36 = por %p34, %p35
    %p37 = scmp.ne.s32.totalorder %s23, %s24
    %p38 = scmp.eq.s32.totalorder %s16, 1
    %p39 = por %p37, %p38
    %p41 = scmp.ne.s32.totalorder %s24, %s40
    %p42 = scmp.eq.s32.totalorder %s16, 0
    %p43 = por %p41, %p42
    %s45 = sadd.s32 %s44, 1
    %p48 = scmp.eq.s32.totalorder %s10, 1
    %p49 = scmp.ne.s32.totalorder %s44, %s46
    %p50 = scmp.eq.s32.totalorder %s10, 0
    %p51 = por %p49, %p50
    %p52 = scmp.ne.s32.totalorder %s44, %s46
    %p53 = scmp.eq.s32.totalorder %s15, 1
    %p54 = por %p52, %p53
    %p55 = scmp.ne.s32.totalorder %s46, %s47
    %p56 = scmp.eq.s32.totalorder %s15, 0
    %p57 = por %p55, %p56
    %p58 = scmp.ne.s32.totalorder %s46, %s47
    %p59 = scmp.eq.s32.totalorder %s16, 1
    %p60 = por %p58, %p59
    %p62 = scmp.ne.s32.totalorder %s47, %s61
    %p63 = scmp.eq.s32.totalorder %s16, 0
    %p64 = por %p62, %p63
    %s66 = sadd.s32 %s65, 1
    %p69 = scmp.eq.s32.totalorder %s10, 1
    %p70 = scmp.ne.s32.totalorder %s65, %s67
    %p71 = scmp.eq.s32.totalorder %s10, 0
    %p72 = por %p70, %p71
    %p73 = scmp.ne.s32.totalorder %s65, %s67
    %p74 = scmp.eq.s32.totalorder %s15, 1
    %p75 = por %p73, %p74
    %p76 = scmp.ne.s32.totalorder %s67, %s68
    %p77 = scmp.eq.s32.totalorder %s15, 0
    %p78 = por %p76, %p77
    %p79 = scmp.ne.s32.totalorder %s67, %s68
    %p80 = scmp.eq.s32.totalorder %s16, 1
    %p81 = por %p79, %p80
    %p83 = scmp.ne.s32.totalorder %s68, %s82
    %p84 = scmp.eq.s32.totalorder %s16, 0
    %p85 = por %p83, %p84
    %s87 = sadd.s32 %s86, 1
    %p90 = scmp.eq.s32.totalorder %s10, 1
    %p91 = scmp.ne.s32.totalorder %s86, %s88
    %p92 = scmp.eq.s32.totalorder %s10, 0
    %p93 = por %p91, %p92
    %p94 = scmp.ne.s32.totalorder %s86, %s88
    %p95 = scmp.eq.s32.totalorder %s15, 1
    %p96 = por %p94, %p95
    %p97 = scmp.ne.s32.totalorder %s88, %s89
    %p98 = scmp.eq.s32.totalorder %s15, 0
    %p99 = por %p97, %p98
    %p100 = scmp.ne.s32.totalorder %s88, %s89
    %p101 = scmp.eq.s32.totalorder %s16, 1
    %p102 = por %p100, %p101
    %p104 = scmp.ne.s32.totalorder %s89, %s103
    %p105 = scmp.eq.s32.totalorder %s16, 0
    %p106 = por %p104, %p105
    %s107 = ssub.s32 %s10, %s17
    %p108 = scmp.eq.s32.totalorder %s107, 0
    %s110 = sadd.s32 %s109, 1
    %s111 = scalar_select %p108, %s109, %s110
    %p114 = pneg %p108
    %p115 = scmp.eq.s32.totalorder %s10, 1
    %p116 = por %p114, %p115
    %p117 = scmp.ne.s32.totalorder %s109, %s112
    %p118 = scmp.eq.s32.totalorder %s10, 0
    %p119 = por %p117, %p118
    %p120 = scmp.ne.s32.totalorder %s109, %s112
    %p121 = scmp.eq.s32.totalorder %s15, 1
    %p122 = por %p120, %p121
    %p123 = scmp.ne.s32.totalorder %s112, %s113
    %p124 = scmp.eq.s32.totalorder %s15, 0
    %p125 = por %p123, %p124
    %p126 = scmp.ne.s32.totalorder %s112, %s113
    %p127 = scmp.eq.s32.totalorder %s16, 1
    %p128 = por %p126, %p127
    %p130 = scmp.ne.s32.totalorder %s113, %s129
    %p131 = scmp.eq.s32.totalorder %s16, 0
    %p132 = por %p130, %p131
    %p133 = scmp.le.s32.totalorder 1, %s10
    %p134 = scmp.lt.s32.totalorder %s10, 3
    %p135 = pnand %p133, %p134
    %p136 = pneg %p135
    // Predicated region
    $region9: #{block_forward.1} parent=5 // pred_check
      _
    $region10: #{block_forward.1} parent=5 // pred_check_branch
      %138 = sbr.rel (%p135) target = $region12
    $region11: #{block_forward.1} parent=5 // pred_region
      %s139 = ssub.s32 %s10, 1
      // Predicated region
      $region13: #{block_forward.1} parent=11 // pred_check
        %p140 = pneg %p57
      $region14: #{block_forward.1} parent=11 // pred_check_branch
        %142 = sbr.rel (%p140) target = $region16
      $region15: #{block_forward.1} parent=11 // pred_region
        _
      $region16: #{block_forward.1} parent=11 // pred_fallthru
        _
      // Predicated region
      $region17: #{block_forward.1} parent=11 // pred_check
        %p143 = pneg %p78
      $region18: #{block_forward.1} parent=11 // pred_check_branch
        %145 = sbr.rel (%p143) target = $region20
      $region19: #{block_forward.1} parent=11 // pred_region
        _
      $region20: #{block_forward.1} parent=11 // pred_fallthru
        _
      // Predicated region
      $region21: #{block_forward.1} parent=11 // pred_check
        %p146 = pneg %p99
      $region22: #{block_forward.1} parent=11 // pred_check_branch
        %148 = sbr.rel (%p146) target = $region24
      $region23: #{block_forward.1} parent=11 // pred_region
        _
      $region24: #{block_forward.1} parent=11 // pred_fallthru
        _
    $region12: #{block_forward.1} parent=5 // pred_fallthru
      _
    %p149 = scmp.lt.s32.totalorder %s10, 2
    // Predicated region
    $region25: #{block_forward.1} parent=5 // pred_check
      %p150 = pneg %p149
    $region26: #{block_forward.1} parent=5 // pred_check_branch
      %152 = sbr.rel (%p150) target = $region28
    $region27: #{block_forward.1} parent=5 // pred_region
      // Predicated region
      $region29: #{block_forward.1} parent=27 // pred_check
        %p153 = pneg %p30
      $region30: #{block_forward.1} parent=27 // pred_check_branch
        %155 = sbr.rel (%p153) target = $region32
      $region31: #{block_forward.1} parent=27 // pred_region
        %p156 = scmp.lt.s32.totalorder %s10, 1
        %s157 = scalar_select %p156, %s10, 1
        %s158 = smul.addr %s157, 36
        %s159 = smul.addr %s158, 4
        %s160 = scalar_lea.vmem %s0, %s159
      $region32: #{block_forward.1} parent=27 // pred_fallthru
        _
    $region28: #{block_forward.1} parent=5 // pred_fallthru
      _
    %p161 = scmp.le.s32.totalorder 1, %s10
    %p162 = scmp.lt.s32.totalorder %s10, 3
    %p163 = pnand %p161, %p162
    %p164 = pneg %p163
    // Predicated region
    $region33: #{block_forward.1} parent=5 // pred_check
      _
    $region34: #{block_forward.1} parent=5 // pred_check_branch
      %166 = sbr.rel (%p163) target = $region36
    $region35: #{block_forward.1} parent=5 // pred_region
      %s167 = ssub.s32 %s10, 1
      %p168 = scmp.lt.s32.totalorder %s15, 1
      %s169 = scalar_select %p168, %s15, 1
      %s170 = smul.addr %s169, 36
      %s171 = smul.addr %s170, 4
      %s172 = scalar_lea.vmem %s0, %s171
      %p173 = pneg %p36
      %p174 = pneg %p33
      %p175 = pneg %p57
      %p176 = pneg %p54
      %p177 = pneg %p78
      %p178 = pneg %p75
      %p179 = pneg %p99
      %p180 = pneg %p96
      %p181 = pneg %p125
      %p182 = pneg %p122
      %p183 = scmp.lt.s32.totalorder %s15, 1
      %s184 = scalar_select %p183, %s15, 1
      %s185 = smul.addr %s184, 30
      %s186 = smul.addr %s185, 8
      %s187 = scalar_lea.vmem %s4, %s186
      %p188 = scmp.lt.s32.totalorder %s15, 1
      %s189 = scalar_select %p188, %s15, 1
      %s190 = smul.addr %s189, 36
      %s191 = smul.addr %s190, 4
      %s192 = scalar_lea.vmem %s0, %s191
      %p193 = scmp.lt.s32.totalorder %s15, 1
      %s194 = scalar_select %p193, %s15, 1
      %s195 = smul.addr %s194, 30
      %s196 = smul.addr %s195, 8
      %s197 = scalar_lea.vmem %s4, %s196
      %v199 = vld [vmem:[%s192] sm:$0xf]
      %v200 = vld [vmem:[%s192 + $0x4] sm:$0xf]
      %v201 = vld [vmem:[%s192 + $0x8] sm:$0xf]
      %v202 = vld [vmem:[%s192 + $0xc] sm:$0xf]
      %v203 = vld [vmem:[%s192 + $0x10] sm:$0xf]
      %v204 = vld [vmem:[%s192 + $0x14] sm:$0xf]
      %v205 = vld [vmem:[%s192 + $0x18] sm:$0xf]
      %v206 = vld [vmem:[%s192 + $0x1c] sm:$0xf]
      %v207 = vld [vmem:[%s192 + $0x20] sm:$0xf]
      %v208 = vld [vmem:[%s192 + $0x24] sm:$0xf]
      %v209 = vld [vmem:[%s192 + $0x28] sm:$0xf]
      %v210 = vld [vmem:[%s192 + $0x2c] sm:$0xf]
      %v211 = vld [vmem:[%s192 + $0x30] sm:$0xf]
      %v212 = vld [vmem:[%s192 + $0x34] sm:$0xf]
      %v213 = vld [vmem:[%s192 + $0x38] sm:$0xf]
      %v214 = vld [vmem:[%s192 + $0x3c] sm:$0xf]
      %v215 = vld [vmem:[%s192 + $0x40] sm:$0xf]
      %v216 = vld [vmem:[%s192 + $0x44] sm:$0xf]
      %v217 = vld [vmem:[%s192 + $0x48] sm:$0xf]
      %v218 = vld [vmem:[%s192 + $0x4c] sm:$0xf]
      %v219 = vld [vmem:[%s192 + $0x50] sm:$0xf]
      %v220 = vld [vmem:[%s192 + $0x54] sm:$0xf]
      %v221 = vld [vmem:[%s192 + $0x58] sm:$0xf]
      %v222 = vld [vmem:[%s192 + $0x5c] sm:$0xf]
      %v223 = vld [vmem:[%s192 + $0x60] sm:$0xf]
      %v224 = vld [vmem:[%s192 + $0x64] sm:$0xf]
      %v225 = vld [vmem:[%s192 + $0x68] sm:$0xf]
      %v226 = vld [vmem:[%s192 + $0x6c] sm:$0xf]
      %v227 = vld [vmem:[%s192 + $0x70] sm:$0xf]
      %v228 = vld [vmem:[%s192 + $0x74] sm:$0xf]
      %v229 = vld [vmem:[%s192 + $0x78] sm:$0xf]
      %v230 = vld [vmem:[%s192 + $0x7c] sm:$0xf]
      %v231 = vld [vmem:[%s1] sm:$0xf]
      %v232 = vld [vmem:[%s1 + $0x4] sm:$0x1]
      %v233 = vld [vmem:[%s192 + $0x80] sm:$0xf]
      %v234 = vld [vmem:[%s192 + $0x84] sm:$0xf]
      %s235 = scalar_lea.vmem %s1, 8
      %v236 = vld [vmem:[%s235] sm:$0xf]
      %v237 = vld [vmem:[%s235 + $0x4] sm:$0x1]
      %v270 = vunpack.c.l.b16 %v201
      %v271 = vunpack.c.l.b16 %v202
      %v272 = vunpack.c.l.b16 %v203
      %v273 = vunpack.c.l.b16 %v204
      %v274 = vunpack.c.l.b16 %v205
      %v275 = vunpack.c.l.b16 %v206
      %v276 = vunpack.c.l.b16 %v207
      %v277 = vunpack.c.l.b16 %v208
      %v278 = vunpack.c.l.b16 %v209
      %v279 = vunpack.c.l.b16 %v210
      %v280 = vunpack.c.l.b16 %v211
      %v281 = vunpack.c.l.b16 %v212
      %v282 = vunpack.c.l.b16 %v213
      %v283 = vunpack.c.l.b16 %v214
      %v284 = vunpack.c.l.b16 %v215
      %v285 = vunpack.c.l.b16 %v216
      %v286 = vunpack.c.l.b16 %v217
      %v287 = vunpack.c.l.b16 %v218
      %v288 = vunpack.c.l.b16 %v219
      %v289 = vunpack.c.l.b16 %v220
      %v290 = vunpack.c.l.b16 %v221
      %v291 = vunpack.c.l.b16 %v222
      %v292 = vunpack.c.l.b16 %v223
      %v293 = vunpack.c.l.b16 %v224
      %v294 = vunpack.c.l.b16 %v225
      %v295 = vunpack.c.l.b16 %v226
      %v296 = vunpack.c.l.b16 %v227
      %v297 = vunpack.c.l.b16 %v228
      %v298 = vunpack.c.l.b16 %v229
      %v299 = vunpack.c.l.b16 %v230
      %v300 = vunpack.c.l.b16 %v233
      %v301 = vunpack.c.l.b16 %v234
      %v302 = vpack.c.b16 %v271, %v270
      %v303 = vpack.c.b16 %v273, %v272
      %v304 = vpack.c.b16 %v275, %v274
      %v305 = vpack.c.b16 %v277, %v276
      %v306 = vpack.c.b16 %v279, %v278
      %v307 = vpack.c.b16 %v281, %v280
      %v308 = vpack.c.b16 %v283, %v282
      %v309 = vpack.c.b16 %v285, %v284
      %v310 = vpack.c.b16 %v287, %v286
      %v311 = vpack.c.b16 %v289, %v288
      %v312 = vpack.c.b16 %v291, %v290
      %v313 = vpack.c.b16 %v293, %v292
      %v314 = vpack.c.b16 %v295, %v294
      %v315 = vpack.c.b16 %v297, %v296
      %v316 = vpack.c.b16 %v299, %v298
      %v317 = vpack.c.b16 %v301, %v300
      %v320 = vunpack.c.l.b16 %v236
      %v321 = vunpack.c.l.b16 %v237
      %v322 = vpack.c.b16 %v321, %v320
      %vm323 = vcmask 72704
      %v325 = vsel %vm323, %v302, 0
      %v328 = vsel %vm323, %v303, 0
      %v331 = vsel %vm323, %v304, 0
      %v334 = vsel %vm323, %v305, 0
      %v337 = vsel %vm323, %v306, 0
      %v340 = vsel %vm323, %v307, 0
      %v343 = vsel %vm323, %v308, 0
      %v346 = vsel %vm323, %v309, 0
      %v349 = vsel %vm323, %v310, 0
      %v352 = vsel %vm323, %v311, 0
      %v355 = vsel %vm323, %v312, 0
      %v358 = vsel %vm323, %v313, 0
      %v361 = vsel %vm323, %v314, 0
      %v364 = vsel %vm323, %v315, 0
      %v367 = vsel %vm323, %v316, 0
      %v370 = vsel %vm323, %v317, 0
      %vm372 = vcmask 1043456
      %vm373 = vcmask 1044480
      %v374 = vsel %vm372, 4294967295, 65535
      %v375 = vsel %vm373, %v374, 0
      %v377 = vand.u32 %v322, %v375
      %379 = vmatprep.subr.bf16.mxu0 0
      %380 = vmatpush1.bf16.msra.mxu0 %v377
      %381 = vmatprep.subr.bf16.mxu0 0
      %382 = vmatpush1.bf16.msra.mxu0 0
      %383 = vmatprep.subr.bf16.mxu0 0
      %384 = vmatpush1.bf16.msra.mxu0 0
      %385 = vmatprep.subr.bf16.mxu0 0
      %386 = vmatpush1.bf16.msra.mxu0 0
      %387 = vmatprep.subr.bf16.mxu0 0
      %388 = vmatpush1.bf16.msra.mxu0 0
      %389 = vmatprep.subr.bf16.mxu0 0
      %390 = vmatpush1.bf16.msra.mxu0 0
      %391 = vmatprep.subr.bf16.mxu0 0
      %392 = vmatpush1.bf16.msra.mxu0 0
      %393 = vmatprep.subr.bf16.mxu0 0
      %394 = vmatpush1.bf16.msra.mxu0 0
      %395 = vmatprep.subr.bf16.mxu0 0
      %396 = vmatpush1.bf16.msra.mxu0 0
      %397 = vmatprep.subr.bf16.mxu0 0
      %398 = vmatpush1.bf16.msra.mxu0 0
      %399 = vmatprep.subr.bf16.mxu0 0
      %400 = vmatpush1.bf16.msra.mxu0 0
      %401 = vmatprep.subr.bf16.mxu0 0
      %402 = vmatpush1.bf16.msra.mxu0 0
      %403 = vmatprep.subr.bf16.mxu0 0
      %404 = vmatpush1.bf16.msra.mxu0 0
      %405 = vmatprep.subr.bf16.mxu0 0
      %406 = vmatpush1.bf16.msra.mxu0 0
      %407 = vmatprep.subr.bf16.mxu0 0
      %408 = vmatpush1.bf16.msra.mxu0 0
      %409 = vmatprep.subr.bf16.mxu0 0
      %410 = vmatpush1.bf16.msra.mxu0 0
      %411 = vmatprep.mubr.bf16.mxu0 0
      %412 = vmatmul.mubr.bf16.gmra.mrb[0].mxu0 %v325
      %v413 = vpop.f32.mrb[0].mxu0
      %v414 = vadd.f32 0.0, %v413
      %v415 = vpop.f32.mrb[0].mxu0
      %v416 = vpop.f32.mrb[0].mxu0
      %v417 = vadd.f32 0.0, %v416
      %v418 = vpop.f32.mrb[0].mxu0
      %419 = vmatprep.mubr.bf16.mxu0 0
      %420 = vmatmul.mubr.bf16.gmra.mrb[0].mxu0 %v328
      %v421 = vpop.f32.mrb[0].mxu0
      %v422 = vadd.f32 0.0, %v421
      %v423 = vpop.f32.mrb[0].mxu0
      %v424 = vpop.f32.mrb[0].mxu0
      %v425 = vadd.f32 0.0, %v424
      %v426 = vpop.f32.mrb[0].mxu0
      %427 = vmatprep.mubr.bf16.mxu0 0
      %428 = vmatmul.mubr.bf16.gmra.mrb[0].mxu0 %v331
      %v429 = vpop.f32.mrb[0].mxu0
      %v430 = vadd.f32 0.0, %v429
      %v431 = vpop.f32.mrb[0].mxu0
      %v432 = vpop.f32.mrb[0].mxu0
      %v433 = vadd.f32 0.0, %v432
      %v434 = vpop.f32.mrb[0].mxu0
      %435 = vmatprep.mubr.bf16.mxu0 0
      %436 = vmatmul.mubr.bf16.gmra.mrb[0].mxu0 %v334
      %v437 = vpop.f32.mrb[0].mxu0
      %v438 = vadd.f32 0.0, %v437
      %v439 = vpop.f32.mrb[0].mxu0
      %v440 = vpop.f32.mrb[0].mxu0
      %v441 = vadd.f32 0.0, %v440
      %v442 = vpop.f32.mrb[0].mxu0
      %443 = vmatprep.mubr.bf16.mxu0 0
      %444 = vmatmul.mubr.bf16.gmra.mrb[0].mxu0 %v337
      %v445 = vpop.f32.mrb[0].mxu0
      %v446 = vadd.f32 0.0, %v445
      %v447 = vpop.f32.mrb[0].mxu0
      %v448 = vpop.f32.mrb[0].mxu0
      %v449 = vadd.f32 0.0, %v448
      %v450 = vpop.f32.mrb[0].mxu0
      %451 = vmatprep.mubr.bf16.mxu0 0
      %452 = vmatmul.mubr.bf16.gmra.mrb[0].mxu0 %v340
      %v453 = vpop.f32.mrb[0].mxu0
      %v454 = vadd.f32 0.0, %v453
      %v455 = vpop.f32.mrb[0].mxu0
      %v456 = vpop.f32.mrb[0].mxu0
      %v457 = vadd.f32 0.0, %v456
      %v458 = vpop.f32.mrb[0].mxu0
      %459 = vmatprep.mubr.bf16.mxu0 0
      %460 = vmatmul.mubr.bf16.gmra.mrb[0].mxu0 %v343
      %v461 = vpop.f32.mrb[0].mxu0
      %v462 = vadd.f32 0.0, %v461
      %v463 = vpop.f32.mrb[0].mxu0
      %v464 = vpop.f32.mrb[0].mxu0
      %v465 = vadd.f32 0.0, %v464
      %v466 = vpop.f32.mrb[0].mxu0
      %467 = vmatprep.mubr.bf16.mxu0 0
      %468 = vmatmul.mubr.bf16.gmra.mrb[0].mxu0 %v346
      %v469 = vpop.f32.mrb[0].mxu0
      %v470 = vadd.f32 0.0, %v469
      %v471 = vpop.f32.mrb[0].mxu0
      %v472 = vpop.f32.mrb[0].mxu0
      %v473 = vadd.f32 0.0, %v472
      %v474 = vpop.f32.mrb[0].mxu0
      %475 = vmatprep.mubr.bf16.mxu0 0
      %476 = vmatmul.mubr.bf16.gmra.mrb[0].mxu0 %v349
      %v477 = vpop.f32.mrb[0].mxu0
      %v478 = vadd.f32 0.0, %v477
      %v479 = vpop.f32.mrb[0].mxu0
      %v480 = vpop.f32.mrb[0].mxu0
      %v481 = vadd.f32 0.0, %v480
      %v482 = vpop.f32.mrb[0].mxu0
      %483 = vmatprep.mubr.bf16.mxu0 0
      %484 = vmatmul.mubr.bf16.gmra.mrb[0].mxu0 %v352
      %v485 = vpop.f32.mrb[0].mxu0
      %v486 = vadd.f32 0.0, %v485
      %v487 = vpop.f32.mrb[0].mxu0
      %v488 = vpop.f32.mrb[0].mxu0
      %v489 = vadd.f32 0.0, %v488
      %v490 = vpop.f32.mrb[0].mxu0
      %491 = vmatprep.mubr.bf16.mxu0 0
      %492 = vmatmul.mubr.bf16.gmra.mrb[0].mxu0 %v355
      %v493 = vpop.f32.mrb[0].mxu0
      %v494 = vadd.f32 0.0, %v493
      %v495 = vpop.f32.mrb[0].mxu0
      %v496 = vpop.f32.mrb[0].mxu0
      %v497 = vadd.f32 0.0, %v496
      %v498 = vpop.f32.mrb[0].mxu0
      %499 = vmatprep.mubr.bf16.mxu0 0
      %500 = vmatmul.mubr.bf16.gmra.mrb[0].mxu0 %v358
      %v501 = vpop.f32.mrb[0].mxu0
      %v502 = vadd.f32 0.0, %v501
      %v503 = vpop.f32.mrb[0].mxu0
      %v504 = vpop.f32.mrb[0].mxu0
      %v505 = vadd.f32 0.0, %v504
      %v506 = vpop.f32.mrb[0].mxu0
      %507 = vmatprep.mubr.bf16.mxu0 0
      %508 = vmatmul.mubr.bf16.gmra.mrb[0].mxu0 %v361
      %v509 = vpop.f32.mrb[0].mxu0
      %v510 = vadd.f32 0.0, %v509
      %v511 = vpop.f32.mrb[0].mxu0
      %v512 = vpop.f32.mrb[0].mxu0
      %v513 = vadd.f32 0.0, %v512
      %v514 = vpop.f32.mrb[0].mxu0
      %515 = vmatprep.mubr.bf16.mxu0 0
      %516 = vmatmul.mubr.bf16.gmra.mrb[0].mxu0 %v364
      %v517 = vpop.f32.mrb[0].mxu0
      %v518 = vadd.f32 0.0, %v517
      %v519 = vpop.f32.mrb[0].mxu0
      %v520 = vpop.f32.mrb[0].mxu0
      %v521 = vadd.f32 0.0, %v520
      %v522 = vpop.f32.mrb[0].mxu0
      %523 = vmatprep.mubr.bf16.mxu0 0
      %524 = vmatmul.mubr.bf16.gmra.mrb[0].mxu0 %v367
      %v525 = vpop.f32.mrb[0].mxu0
      %v526 = vadd.f32 0.0, %v525
      %v527 = vpop.f32.mrb[0].mxu0
      %v528 = vpop.f32.mrb[0].mxu0
      %v529 = vadd.f32 0.0, %v528
      %v530 = vpop.f32.mrb[0].mxu0
      %531 = vmatprep.mubr.bf16.mxu0 0
      %532 = vmatmul.mubr.bf16.gmra.mrb[0].mxu0 %v370
      %v533 = vpop.f32.mrb[0].mxu0
      %v534 = vadd.f32 0.0, %v533
      %v535 = vpop.f32.mrb[0].mxu0
      %v536 = vpop.f32.mrb[0].mxu0
      %v537 = vadd.f32 0.0, %v536
      %v538 = vpop.f32.mrb[0].mxu0
      %539 = vdwg.mxu0
      %v542 = vunpack.c.l.b16 %v199
      %v543 = vunpack.c.l.b16 %v200
      %v544 = vpack.c.b16 %v543, %v542
      %v547 = vunpack.c.l.b16 %v231
      %v548 = vunpack.c.l.b16 %v232
      %v549 = vpack.c.b16 %v548, %v547
      %v551 = vsel %vm323, %v544, 0
      %v554 = vand.u32 %v549, %v375
      %556 = vmatprep.subr.bf16.mxu0 0
      %557 = vmatpush1.bf16.msra.mxu0 %v554
      %558 = vmatprep.subr.bf16.mxu0 0
      %559 = vmatpush1.bf16.msra.mxu0 0
      %560 = vmatprep.subr.bf16.mxu0 0
      %561 = vmatpush1.bf16.msra.mxu0 0
      %562 = vmatprep.subr.bf16.mxu0 0
      %563 = vmatpush1.bf16.msra.mxu0 0
      %564 = vmatprep.subr.bf16.mxu0 0
      %565 = vmatpush1.bf16.msra.mxu0 0
      %566 = vmatprep.subr.bf16.mxu0 0
      %567 = vmatpush1.bf16.msra.mxu0 0
      %568 = vmatprep.subr.bf16.mxu0 0
      %569 = vmatpush1.bf16.msra.mxu0 0
      %570 = vmatprep.subr.bf16.mxu0 0
      %571 = vmatpush1.bf16.msra.mxu0 0
      %572 = vmatprep.subr.bf16.mxu0 0
      %573 = vmatpush1.bf16.msra.mxu0 0
      %574 = vmatprep.subr.bf16.mxu0 0
      %575 = vmatpush1.bf16.msra.mxu0 0
      %576 = vmatprep.subr.bf16.mxu0 0
      %577 = vmatpush1.bf16.msra.mxu0 0
      %578 = vmatprep.subr.bf16.mxu0 0
      %579 = vmatpush1.bf16.msra.mxu0 0
      %580 = vmatprep.subr.bf16.mxu0 0
      %581 = vmatpush1.bf16.msra.mxu0 0
      %582 = vmatprep.subr.bf16.mxu0 0
      %583 = vmatpush1.bf16.msra.mxu0 0
      %584 = vmatprep.subr.bf16.mxu0 0
      %585 = vmatpush1.bf16.msra.mxu0 0
      %586 = vmatprep.subr.bf16.mxu0 0
      %587 = vmatpush1.bf16.msra.mxu0 0
      %588 = vmatprep.mubr.bf16.mxu0 0
      %589 = vmatmul.mubr.bf16.gmra.mrb[0].mxu0 %v551
      %v590 = vpop.f32.mrb[0].mxu0
      %v591 = vadd.f32 %v414, %v590
      %v592 = vpop.f32.mrb[0].mxu0
      %v593 = vpop.f32.mrb[0].mxu0
      %v594 = vadd.f32 %v417, %v593
      %v595 = vpop.f32.mrb[0].mxu0
      %596 = vmatprep.mubr.bf16.mxu0 0
      %597 = vmatmul.mubr.bf16.gmra.mrb[0].mxu0 %v325
      %v598 = vpop.f32.mrb[0].mxu0
      %v599 = vadd.f32 %v422, %v598
      %v600 = vpop.f32.mrb[0].mxu0
      %v601 = vpop.f32.mrb[0].mxu0
      %v602 = vadd.f32 %v425, %v601
      %v603 = vpop.f32.mrb[0].mxu0
      %604 = vmatprep.mubr.bf16.mxu0 0
      %605 = vmatmul.mubr.bf16.gmra.mrb[0].mxu0 %v328
      %v606 = vpop.f32.mrb[0].mxu0
      %v607 = vadd.f32 %v430, %v606
      %v608 = vpop.f32.mrb[0].mxu0
      %v609 = vpop.f32.mrb[0].mxu0
      %v610 = vadd.f32 %v433, %v609
      %v611 = vpop.f32.mrb[0].mxu0
      %612 = vmatprep.mubr.bf16.mxu0 0
      %613 = vmatmul.mubr.bf16.gmra.mrb[0].mxu0 %v331
      %v614 = vpop.f32.mrb[0].mxu0
      %v615 = vadd.f32 %v438, %v614
      %v616 = vpop.f32.mrb[0].mxu0
      %v617 = vpop.f32.mrb[0].mxu0
      %v618 = vadd.f32 %v441, %v617
      %v619 = vpop.f32.mrb[0].mxu0
      %620 = vmatprep.mubr.bf16.mxu0 0
      %621 = vmatmul.mubr.bf16.gmra.mrb[0].mxu0 %v334
      %v622 = vpop.f32.mrb[0].mxu0
      %v623 = vadd.f32 %v446, %v622
      %v624 = vpop.f32.mrb[0].mxu0
      %v625 = vpop.f32.mrb[0].mxu0
      %v626 = vadd.f32 %v449, %v625
      %v627 = vpop.f32.mrb[0].mxu0
      %628 = vmatprep.mubr.bf16.mxu0 0
      %629 = vmatmul.mubr.bf16.gmra.mrb[0].mxu0 %v337
      %v630 = vpop.f32.mrb[0].mxu0
      %v631 = vadd.f32 %v454, %v630
      %v632 = vpop.f32.mrb[0].mxu0
      %v633 = vpop.f32.mrb[0].mxu0
      %v634 = vadd.f32 %v457, %v633
      %v635 = vpop.f32.mrb[0].mxu0
      %636 = vmatprep.mubr.bf16.mxu0 0
      %637 = vmatmul.mubr.bf16.gmra.mrb[0].mxu0 %v340
      %v638 = vpop.f32.mrb[0].mxu0
      %v639 = vadd.f32 %v462, %v638
      %v640 = vpop.f32.mrb[0].mxu0
      %v641 = vpop.f32.mrb[0].mxu0
      %v642 = vadd.f32 %v465, %v641
      %v643 = vpop.f32.mrb[0].mxu0
      %644 = vmatprep.mubr.bf16.mxu0 0
      %645 = vmatmul.mubr.bf16.gmra.mrb[0].mxu0 %v343
      %v646 = vpop.f32.mrb[0].mxu0
      %v647 = vadd.f32 %v470, %v646
      %v648 = vpop.f32.mrb[0].mxu0
      %v649 = vpop.f32.mrb[0].mxu0
      %v650 = vadd.f32 %v473, %v649
      %v651 = vpop.f32.mrb[0].mxu0
      %652 = vmatprep.mubr.bf16.mxu0 0
      %653 = vmatmul.mubr.bf16.gmra.mrb[0].mxu0 %v346
      %v654 = vpop.f32.mrb[0].mxu0
      %v655 = vadd.f32 %v478, %v654
      %v656 = vpop.f32.mrb[0].mxu0
      %v657 = vpop.f32.mrb[0].mxu0
      %v658 = vadd.f32 %v481, %v657
      %v659 = vpop.f32.mrb[0].mxu0
      %660 = vmatprep.mubr.bf16.mxu0 0
      %661 = vmatmul.mubr.bf16.gmra.mrb[0].mxu0 %v349
      %v662 = vpop.f32.mrb[0].mxu0
      %v663 = vadd.f32 %v486, %v662
      %v664 = vpop.f32.mrb[0].mxu0
      %v665 = vpop.f32.mrb[0].mxu0
      %v666 = vadd.f32 %v489, %v665
      %v667 = vpop.f32.mrb[0].mxu0
      %668 = vmatprep.mubr.bf16.mxu0 0
      %669 = vmatmul.mubr.bf16.gmra.mrb[0].mxu0 %v352
      %v670 = vpop.f32.mrb[0].mxu0
      %v671 = vadd.f32 %v494, %v670
      %v672 = vpop.f32.mrb[0].mxu0
      %v673 = vpop.f32.mrb[0].mxu0
      %v674 = vadd.f32 %v497, %v673
      %v675 = vpop.f32.mrb[0].mxu0
      %676 = vmatprep.mubr.bf16.mxu0 0
      %677 = vmatmul.mubr.bf16.gmra.mrb[0].mxu0 %v355
      %v678 = vpop.f32.mrb[0].mxu0
      %v679 = vadd.f32 %v502, %v678
      %v680 = vpop.f32.mrb[0].mxu0
      %v681 = vpop.f32.mrb[0].mxu0
      %v682 = vadd.f32 %v505, %v681
      %v683 = vpop.f32.mrb[0].mxu0
      %684 = vmatprep.mubr.bf16.mxu0 0
      %685 = vmatmul.mubr.bf16.gmra.mrb[0].mxu0 %v358
      %v686 = vpop.f32.mrb[0].mxu0
      %v687 = vadd.f32 %v510, %v686
      %v688 = vpop.f32.mrb[0].mxu0
      %v689 = vpop.f32.mrb[0].mxu0
      %v690 = vadd.f32 %v513, %v689
      %v691 = vpop.f32.mrb[0].mxu0
      %692 = vmatprep.mubr.bf16.mxu0 0
      %693 = vmatmul.mubr.bf16.gmra.mrb[0].mxu0 %v361
      %v694 = vpop.f32.mrb[0].mxu0
      %v695 = vadd.f32 %v518, %v694
      %v696 = vpop.f32.mrb[0].mxu0
      %v697 = vpop.f32.mrb[0].mxu0
      %v698 = vadd.f32 %v521, %v697
      %v699 = vpop.f32.mrb[0].mxu0
      %700 = vmatprep.mubr.bf16.mxu0 0
      %701 = vmatmul.mubr.bf16.gmra.mrb[0].mxu0 %v364
      %v702 = vpop.f32.mrb[0].mxu0
      %v703 = vadd.f32 %v526, %v702
      %v704 = vpop.f32.mrb[0].mxu0
      %v705 = vpop.f32.mrb[0].mxu0
      %v706 = vadd.f32 %v529, %v705
      %v707 = vpop.f32.mrb[0].mxu0
      %708 = vmatprep.mubr.bf16.mxu0 0
      %709 = vmatmul.mubr.bf16.gmra.mrb[0].mxu0 %v367
      %v710 = vpop.f32.mrb[0].mxu0
      %v711 = vadd.f32 %v534, %v710
      %v712 = vpop.f32.mrb[0].mxu0
      %v713 = vpop.f32.mrb[0].mxu0
      %v714 = vadd.f32 %v537, %v713
      %v715 = vpop.f32.mrb[0].mxu0
      %716 = vdwg.mxu0
      %v717 = vld [vmem:[%s192 + $0x10] sm:$0xf]
      %v718 = vld [vmem:[%s192 + $0x14] sm:$0xf]
      %v719 = vld [vmem:[%s192 + $0x18] sm:$0xf]
      %v720 = vld [vmem:[%s192 + $0x1c] sm:$0xf]
      %v721 = vld [vmem:[%s192 + $0x20] sm:$0xf]
      %v722 = vld [vmem:[%s192 + $0x24] sm:$0xf]
      %v723 = vld [vmem:[%s192 + $0x28] sm:$0xf]
      %v724 = vld [vmem:[%s192 + $0x2c] sm:$0xf]
      %v725 = vld [vmem:[%s192 + $0x30] sm:$0xf]
      %v726 = vld [vmem:[%s192 + $0x34] sm:$0xf]
      %v727 = vld [vmem:[%s192 + $0x38] sm:$0xf]
      %v728 = vld [vmem:[%s192 + $0x3c] sm:$0xf]
      %v729 = vld [vmem:[%s192 + $0x40] sm:$0xf]
      %v730 = vld [vmem:[%s192 + $0x44] sm:$0xf]
      %v731 = vld [vmem:[%s192 + $0x48] sm:$0xf]
      %v732 = vld [vmem:[%s192 + $0x4c] sm:$0xf]
      %v733 = vld [vmem:[%s192 + $0x50] sm:$0xf]
      %v734 = vld [vmem:[%s192 + $0x54] sm:$0xf]
      %v735 = vld [vmem:[%s192 + $0x58] sm:$0xf]
      %v736 = vld [vmem:[%s192 + $0x5c] sm:$0xf]
      %v737 = vld [vmem:[%s192 + $0x60] sm:$0xf]
      %v738 = vld [vmem:[%s192 + $0x64] sm:$0xf]
      %v739 = vld [vmem:[%s192 + $0x68] sm:$0xf]
      %v740 = vld [vmem:[%s192 + $0x6c] sm:$0xf]
      %v741 = vld [vmem:[%s192 + $0x70] sm:$0xf]
      %v742 = vld [vmem:[%s192 + $0x74] sm:$0xf]
      %v743 = vld [vmem:[%s192 + $0x78] sm:$0xf]
      %v744 = vld [vmem:[%s192 + $0x7c] sm:$0xf]
      %v745 = vld [vmem:[%s192 + $0x80] sm:$0xf]
      %v746 = vld [vmem:[%s192 + $0x84] sm:$0xf]
      %v747 = vld [vmem:[%s192 + $0x88] sm:$0xf]
      %v748 = vld [vmem:[%s192 + $0x8c] sm:$0xf]
      %s749 = scalar_lea.vmem %s1, 16
      %v750 = vld [vmem:[%s749] sm:$0xf]
      %v751 = vld [vmem:[%s749 + $0x4] sm:$0x1]
      %v784 = vunpack.c.l.b16 %v717
      %v785 = vunpack.c.l.b16 %v718
      %v786 = vunpack.c.l.b16 %v719
      %v787 = vunpack.c.l.b16 %v720
      %v788 = vunpack.c.l.b16 %v721
      %v789 = vunpack.c.l.b16 %v722
      %v790 = vunpack.c.l.b16 %v723
      %v791 = vunpack.c.l.b16 %v724
      %v792 = vunpack.c.l.b16 %v725
      %v793 = vunpack.c.l.b16 %v726
      %v794 = vunpack.c.l.b16 %v727
      %v795 = vunpack.c.l.b16 %v728
      %v796 = vunpack.c.l.b16 %v729
      %v797 = vunpack.c.l.b16 %v730
      %v798 = vunpack.c.l.b16 %v731
      %v799 = vunpack.c.l.b16 %v732
      %v800 = vunpack.c.l.b16 %v733
      %v801 = vunpack.c.l.b16 %v734
      %v802 = vunpack.c.l.b16 %v735
      %v803 = vunpack.c.l.b16 %v736
      %v804 = vunpack.c.l.b16 %v737
      %v805 = vunpack.c.l.b16 %v738
      %v806 = vunpack.c.l.b16 %v739
      %v807 = vunpack.c.l.b16 %v740
      %v808 = vunpack.c.l.b16 %v741
      %v809 = vunpack.c.l.b16 %v742
      %v810 = vunpack.c.l.b16 %v743
      %v811 = vunpack.c.l.b16 %v744
      %v812 = vunpack.c.l.b16 %v745
      %v813 = vunpack.c.l.b16 %v746
      %v814 = vunpack.c.l.b16 %v747
      %v815 = vunpack.c.l.b16 %v748
      %v816 = vpack.c.b16 %v785, %v784
      %v817 = vpack.c.b16 %v787, %v786
      %v818 = vpack.c.b16 %v789, %v788
      %v819 = vpack.c.b16 %v791, %v790
      %v820 = vpack.c.b16 %v793, %v792
      %v821 = vpack.c.b16 %v795, %v794
      %v822 = vpack.c.b16 %v797, %v796
      %v823 = vpack.c.b16 %v799, %v798
      %v824 = vpack.c.b16 %v801, %v800
      %v825 = vpack.c.b16 %v803, %v802
      %v826 = vpack.c.b16 %v805, %v804
      %v827 = vpack.c.b16 %v807, %v806
      %v828 = vpack.c.b16 %v809, %v808
      %v829 = vpack.c.b16 %v811, %v810
      %v830 = vpack.c.b16 %v813, %v812
      %v831 = vpack.c.b16 %v815, %v814
      %v834 = vunpack.c.l.b16 %v750
      %v835 = vunpack.c.l.b16 %v751
      %v836 = vpack.c.b16 %v835, %v834
      %v838 = vsel %vm323, %v816, 0
      %v841 = vsel %vm323, %v817, 0
      %v844 = vsel %vm323, %v818, 0
      %v847 = vsel %vm323, %v819, 0
      %v850 = vsel %vm323, %v820, 0
      %v853 = vsel %vm323, %v821, 0
      %v856 = vsel %vm323, %v822, 0
      %v859 = vsel %vm323, %v823, 0
      %v862 = vsel %vm323, %v824, 0
      %v865 = vsel %vm323, %v825, 0
      %v868 = vsel %vm323, %v826, 0
      %v871 = vsel %vm323, %v827, 0
      %v874 = vsel %vm323, %v828, 0
      %v877 = vsel %vm323, %v829, 0
      %v880 = vsel %vm323, %v830, 0
      %v883 = vsel %vm323, %v831, 0
      %v886 = vand.u32 %v836, %v375
      %888 = vmatprep.subr.bf16.mxu0 0
      %889 = vmatpush1.bf16.msra.mxu0 %v886
      %890 = vmatprep.subr.bf16.mxu0 0
      %891 = vmatpush1.bf16.msra.mxu0 0
      %892 = vmatprep.subr.bf16.mxu0 0
      %893 = vmatpush1.bf16.msra.mxu0 0
      %894 = vmatprep.subr.bf16.mxu0 0
      %895 = vmatpush1.bf16.msra.mxu0 0
      %896 = vmatprep.subr.bf16.mxu0 0
      %897 = vmatpush1.bf16.msra.mxu0 0
      %898 = vmatprep.subr.bf16.mxu0 0
      %899 = vmatpush1.bf16.msra.mxu0 0
      %900 = vmatprep.subr.bf16.mxu0 0
      %901 = vmatpush1.bf16.msra.mxu0 0
      %902 = vmatprep.subr.bf16.mxu0 0
      %903 = vmatpush1.bf16.msra.mxu0 0
      %904 = vmatprep.subr.bf16.mxu0 0
      %905 = vmatpush1.bf16.msra.mxu0 0
      %906 = vmatprep.subr.bf16.mxu0 0
      %907 = vmatpush1.bf16.msra.mxu0 0
      %908 = vmatprep.subr.bf16.mxu0 0
      %909 = vmatpush1.bf16.msra.mxu0 0
      %910 = vmatprep.subr.bf16.mxu0 0
      %911 = vmatpush1.bf16.msra.mxu0 0
      %912 = vmatprep.subr.bf16.mxu0 0
      %913 = vmatpush1.bf16.msra.mxu0 0
      %914 = vmatprep.subr.bf16.mxu0 0
      %915 = vmatpush1.bf16.msra.mxu0 0
      %916 = vmatprep.subr.bf16.mxu0 0
      %917 = vmatpush1.bf16.msra.mxu0 0
      %918 = vmatprep.subr.bf16.mxu0 0
      %919 = vmatpush1.bf16.msra.mxu0 0
      %920 = vmatprep.mubr.bf16.mxu0 0
      %921 = vmatmul.mubr.bf16.gmra.mrb[0].mxu0 %v838
      %v922 = vpop.f32.mrb[0].mxu0
      %v923 = vadd.f32 0.0, %v922
      %v924 = vpop.f32.mrb[0].mxu0
      %v925 = vpop.f32.mrb[0].mxu0
      %v926 = vadd.f32 0.0, %v925
      %v927 = vpop.f32.mrb[0].mxu0
      %928 = vmatprep.mubr.bf16.mxu0 0
      %929 = vmatmul.mubr.bf16.gmra.mrb[0].mxu0 %v841
      %v930 = vpop.f32.mrb[0].mxu0
      %v931 = vadd.f32 0.0, %v930
      %v932 = vpop.f32.mrb[0].mxu0
      %v933 = vpop.f32.mrb[0].mxu0
      %v934 = vadd.f32 0.0, %v933
      %v935 = vpop.f32.mrb[0].mxu0
      %936 = vmatprep.mubr.bf16.mxu0 0
      %937 = vmatmul.mubr.bf16.gmra.mrb[0].mxu0 %v844
      %v938 = vpop.f32.mrb[0].mxu0
      %v939 = vadd.f32 0.0, %v938
      %v940 = vpop.f32.mrb[0].mxu0
      %v941 = vpop.f32.mrb[0].mxu0
      %v942 = vadd.f32 0.0, %v941
      %v943 = vpop.f32.mrb[0].mxu0
      %944 = vmatprep.mubr.bf16.mxu0 0
      %945 = vmatmul.mubr.bf16.gmra.mrb[0].mxu0 %v847
      %v946 = vpop.f32.mrb[0].mxu0
      %v947 = vadd.f32 0.0, %v946
      %v948 = vpop.f32.mrb[0].mxu0
      %v949 = vpop.f32.mrb[0].mxu0
      %v950 = vadd.f32 0.0, %v949
      %v951 = vpop.f32.mrb[0].mxu0
      %952 = vmatprep.mubr.bf16.mxu0 0
      %953 = vmatmul.mubr.bf16.gmra.mrb[0].mxu0 %v850
      %v954 = vpop.f32.mrb[0].mxu0
      %v955 = vadd.f32 0.0, %v954
      %v956 = vpop.f32.mrb[0].mxu0
      %v957 = vpop.f32.mrb[0].mxu0
      %v958 = vadd.f32 0.0, %v957
      %v959 = vpop.f32.mrb[0].mxu0
      %960 = vmatprep.mubr.bf16.mxu0 0
      %961 = vmatmul.mubr.bf16.gmra.mrb[0].mxu0 %v853
      %v962 = vpop.f32.mrb[0].mxu0
      %v963 = vadd.f32 0.0, %v962
      %v964 = vpop.f32.mrb[0].mxu0
      %v965 = vpop.f32.mrb[0].mxu0
      %v966 = vadd.f32 0.0, %v965
      %v967 = vpop.f32.mrb[0].mxu0
      %968 = vmatprep.mubr.bf16.mxu0 0
      %969 = vmatmul.mubr.bf16.gmra.mrb[0].mxu0 %v856
      %v970 = vpop.f32.mrb[0].mxu0
      %v971 = vadd.f32 0.0, %v970
      %v972 = vpop.f32.mrb[0].mxu0
      %v973 = vpop.f32.mrb[0].mxu0
      %v974 = vadd.f32 0.0, %v973
      %v975 = vpop.f32.mrb[0].mxu0
      %976 = vmatprep.mubr.bf16.mxu0 0
      %977 = vmatmul.mubr.bf16.gmra.mrb[0].mxu0 %v859
      %v978 = vpop.f32.mrb[0].mxu0
      %v979 = vadd.f32 0.0, %v978
      %v980 = vpop.f32.mrb[0].mxu0
      %v981 = vpop.f32.mrb[0].mxu0
      %v982 = vadd.f32 0.0, %v981
      %v983 = vpop.f32.mrb[0].mxu0
      %984 = vmatprep.mubr.bf16.mxu0 0
      %985 = vmatmul.mubr.bf16.gmra.mrb[0].mxu0 %v862
      %v986 = vpop.f32.mrb[0].mxu0
      %v987 = vadd.f32 0.0, %v986
      %v988 = vpop.f32.mrb[0].mxu0
      %v989 = vpop.f32.mrb[0].mxu0
      %v990 = vadd.f32 0.0, %v989
      %v991 = vpop.f32.mrb[0].mxu0
      %992 = vmatprep.mubr.bf16.mxu0 0
      %993 = vmatmul.mubr.bf16.gmra.mrb[0].mxu0 %v865
      %v994 = vpop.f32.mrb[0].mxu0
      %v995 = vadd.f32 0.0, %v994
      %v996 = vpop.f32.mrb[0].mxu0
      %v997 = vpop.f32.mrb[0].mxu0
      %v998 = vadd.f32 0.0, %v997
      %v999 = vpop.f32.mrb[0].mxu0
      %1000 = vmatprep.mubr.bf16.mxu0 0
      %1001 = vmatmul.mubr.bf16.gmra.mrb[0].mxu0 %v868
      %v1002 = vpop.f32.mrb[0].mxu0
      %v1003 = vadd.f32 0.0, %v1002
      %v1004 = vpop.f32.mrb[0].mxu0
      %v1005 = vpop.f32.mrb[0].mxu0
      %v1006 = vadd.f32 0.0, %v1005
      %v1007 = vpop.f32.mrb[0].mxu0
      %1008 = vmatprep.mubr.bf16.mxu0 0
      %1009 = vmatmul.mubr.bf16.gmra.mrb[0].mxu0 %v871
      %v1010 = vpop.f32.mrb[0].mxu0
      %v1011 = vadd.f32 0.0, %v1010
      %v1012 = vpop.f32.mrb[0].mxu0
      %v1013 = vpop.f32.mrb[0].mxu0
      %v1014 = vadd.f32 0.0, %v1013
      %v1015 = vpop.f32.mrb[0].mxu0
      %1016 = vmatprep.mubr.bf16.mxu0 0
      %1017 = vmatmul.mubr.bf16.gmra.mrb[0].mxu0 %v874
      %v1018 = vpop.f32.mrb[0].mxu0
      %v1019 = vadd.f32 0.0, %v1018
      %v1020 = vpop.f32.mrb[0].mxu0
      %v1021 = vpop.f32.mrb[0].mxu0
      %v1022 = vadd.f32 0.0, %v1021
      %v1023 = vpop.f32.mrb[0].mxu0
      %1024 = vmatprep.mubr.bf16.mxu0 0
      %1025 = vmatmul.mubr.bf16.gmra.mrb[0].mxu0 %v877
      %v1026 = vpop.f32.mrb[0].mxu0
      %v1027 = vadd.f32 0.0, %v1026
      %v1028 = vpop.f32.mrb[0].mxu0
      %v1029 = vpop.f32.mrb[0].mxu0
      %v1030 = vadd.f32 0.0, %v1029
      %v1031 = vpop.f32.mrb[0].mxu0
      %1032 = vmatprep.mubr.bf16.mxu0 0
      %1033 = vmatmul.mubr.bf16.gmra.mrb[0].mxu0 %v880
      %v1034 = vpop.f32.mrb[0].mxu0
      %v1035 = vadd.f32 0.0, %v1034
      %v1036 = vpop.f32.mrb[0].mxu0
      %v1037 = vpop.f32.mrb[0].mxu0
      %v1038 = vadd.f32 0.0, %v1037
      %v1039 = vpop.f32.mrb[0].mxu0
      %1040 = vmatprep.mubr.bf16.mxu0 0
      %1041 = vmatmul.mubr.bf16.gmra.mrb[0].mxu0 %v883
      %v1042 = vpop.f32.mrb[0].mxu0
      %v1043 = vadd.f32 0.0, %v1042
      %v1044 = vpop.f32.mrb[0].mxu0
      %v1045 = vpop.f32.mrb[0].mxu0
      %v1046 = vadd.f32 0.0, %v1045
      %v1047 = vpop.f32.mrb[0].mxu0
      %1048 = vdwg.mxu0
      %v1049 = vadd.f32 %v591, %v923
      %v1050 = vadd.f32 %v594, %v926
      %v1051 = vadd.f32 %v599, %v931
      %v1052 = vadd.f32 %v602, %v934
      %v1053 = vadd.f32 %v607, %v939
      %v1054 = vadd.f32 %v610, %v942
      %v1055 = vadd.f32 %v615, %v947
      %v1056 = vadd.f32 %v618, %v950
      %v1057 = vadd.f32 %v623, %v955
      %v1058 = vadd.f32 %v626, %v958
      %v1059 = vadd.f32 %v631, %v963
      %v1060 = vadd.f32 %v634, %v966
      %v1061 = vadd.f32 %v639, %v971
      %v1062 = vadd.f32 %v642, %v974
      %v1063 = vadd.f32 %v647, %v979
      %v1064 = vadd.f32 %v650, %v982
      %v1065 = vadd.f32 %v655, %v987
      %v1066 = vadd.f32 %v658, %v990
      %v1067 = vadd.f32 %v663, %v995
      %v1068 = vadd.f32 %v666, %v998
      %v1069 = vadd.f32 %v671, %v1003
      %v1070 = vadd.f32 %v674, %v1006
      %v1071 = vadd.f32 %v679, %v1011
      %v1072 = vadd.f32 %v682, %v1014
      %v1073 = vadd.f32 %v687, %v1019
      %v1074 = vadd.f32 %v690, %v1022
      %v1075 = vadd.f32 %v695, %v1027
      %v1076 = vadd.f32 %v698, %v1030
      %v1077 = vadd.f32 %v703, %v1035
      %v1078 = vadd.f32 %v706, %v1038
      %v1079 = vadd.f32 %v711, %v1043
      %v1080 = vadd.f32 %v714, %v1046
      %v1081 = vld [vmem:[%s2] sm:$0x1]
      %v1083 = vlaneseq
      %v1084 = vshrl.u32 %v1083, 7
      %v1085 = vsub.s32 0, %v1084
      %v1086 = vrot.slane %v1081, %v1085
      %v1088 = vmul.f32 %v1049, %v1086
      %v1089 = vmul.f32 %v1050, %v1086
      %v1090 = vmul.f32 %v1051, %v1086
      %v1091 = vmul.f32 %v1052, %v1086
      %v1092 = vmul.f32 %v1053, %v1086
      %v1093 = vmul.f32 %v1054, %v1086
      %v1094 = vmul.f32 %v1055, %v1086
      %v1095 = vmul.f32 %v1056, %v1086
      %v1096 = vmul.f32 %v1057, %v1086
      %v1097 = vmul.f32 %v1058, %v1086
      %v1098 = vmul.f32 %v1059, %v1086
      %v1099 = vmul.f32 %v1060, %v1086
      %v1100 = vmul.f32 %v1061, %v1086
      %v1101 = vmul.f32 %v1062, %v1086
      %v1102 = vmul.f32 %v1063, %v1086
      %v1103 = vmul.f32 %v1064, %v1086
      %v1104 = vmul.f32 %v1065, %v1086
      %v1105 = vmul.f32 %v1066, %v1086
      %v1106 = vmul.f32 %v1067, %v1086
      %v1107 = vmul.f32 %v1068, %v1086
      %v1108 = vmul.f32 %v1069, %v1086
      %v1109 = vmul.f32 %v1070, %v1086
      %v1110 = vmul.f32 %v1071, %v1086
      %v1111 = vmul.f32 %v1072, %v1086
      %v1112 = vmul.f32 %v1073, %v1086
      %v1113 = vmul.f32 %v1074, %v1086
      %v1114 = vmul.f32 %v1075, %v1086
      %v1115 = vmul.f32 %v1076, %v1086
      %v1116 = vmul.f32 %v1077, %v1086
      %v1117 = vmul.f32 %v1078, %v1086
      %v1118 = vmul.f32 %v1079, %v1086
      %v1119 = vmul.f32 %v1080, %v1086
      %v1120 = vld [vmem:[%s3] sm:$0x1]
      %v1122 = vlaneseq
      %v1123 = vshrl.u32 %v1122, 7
      %v1124 = vsub.s32 0, %v1123
      %v1125 = vrot.slane %v1120, %v1124
      %v1127 = vadd.f32 %v1088, %v1125
      %v1128 = vadd.f32 %v1089, %v1125
      %v1129 = vadd.f32 %v1090, %v1125
      %v1130 = vadd.f32 %v1091, %v1125
      %v1131 = vadd.f32 %v1092, %v1125
      %v1132 = vadd.f32 %v1093, %v1125
      %v1133 = vadd.f32 %v1094, %v1125
      %v1134 = vadd.f32 %v1095, %v1125
      %v1135 = vadd.f32 %v1096, %v1125
      %v1136 = vadd.f32 %v1097, %v1125
      %v1137 = vadd.f32 %v1098, %v1125
      %v1138 = vadd.f32 %v1099, %v1125
      %v1139 = vadd.f32 %v1100, %v1125
      %v1140 = vadd.f32 %v1101, %v1125
      %v1141 = vadd.f32 %v1102, %v1125
      %v1142 = vadd.f32 %v1103, %v1125
      %v1143 = vadd.f32 %v1104, %v1125
      %v1144 = vadd.f32 %v1105, %v1125
      %v1145 = vadd.f32 %v1106, %v1125
      %v1146 = vadd.f32 %v1107, %v1125
      %v1147 = vadd.f32 %v1108, %v1125
      %v1148 = vadd.f32 %v1109, %v1125
      %v1149 = vadd.f32 %v1110, %v1125
      %v1150 = vadd.f32 %v1111, %v1125
      %v1151 = vadd.f32 %v1112, %v1125
      %v1152 = vadd.f32 %v1113, %v1125
      %v1153 = vadd.f32 %v1114, %v1125
      %v1154 = vadd.f32 %v1115, %v1125
      %v1155 = vadd.f32 %v1116, %v1125
      %v1156 = vadd.f32 %v1117, %v1125
      %v1157 = vadd.f32 %v1118, %v1125
      %v1158 = vadd.f32 %v1119, %v1125
      %v1159 = vmax.f32 %v1127, 0.0
      %v1160 = vmax.f32 %v1128, 0.0
      %v1161 = vmax.f32 %v1129, 0.0
      %v1162 = vmax.f32 %v1130, 0.0
      %v1163 = vmax.f32 %v1131, 0.0
      %v1164 = vmax.f32 %v1132, 0.0
      %v1165 = vmax.f32 %v1133, 0.0
      %v1166 = vmax.f32 %v1134, 0.0
      %v1167 = vmax.f32 %v1135, 0.0
      %v1168 = vmax.f32 %v1136, 0.0
      %v1169 = vmax.f32 %v1137, 0.0
      %v1170 = vmax.f32 %v1138, 0.0
      %v1171 = vmax.f32 %v1139, 0.0
      %v1172 = vmax.f32 %v1140, 0.0
      %v1173 = vmax.f32 %v1141, 0.0
      %v1174 = vmax.f32 %v1142, 0.0
      %v1175 = vmax.f32 %v1143, 0.0
      %v1176 = vmax.f32 %v1144, 0.0
      %v1177 = vmax.f32 %v1145, 0.0
      %v1178 = vmax.f32 %v1146, 0.0
      %v1179 = vmax.f32 %v1147, 0.0
      %v1180 = vmax.f32 %v1148, 0.0
      %v1181 = vmax.f32 %v1149, 0.0
      %v1182 = vmax.f32 %v1150, 0.0
      %v1183 = vmax.f32 %v1151, 0.0
      %v1184 = vmax.f32 %v1152, 0.0
      %v1185 = vmax.f32 %v1153, 0.0
      %v1186 = vmax.f32 %v1154, 0.0
      %v1187 = vmax.f32 %v1155, 0.0
      %v1188 = vmax.f32 %v1156, 0.0
      %v1189 = vmax.f32 %v1157, 0.0
      %v1190 = vmax.f32 %v1158, 0.0
      %v1191 = vadd.f32 %v1159, %v1161
      %v1192 = vadd.f32 %v1160, %v1162
      %v1193 = vadd.f32 %v1161, %v1163
      %v1194 = vadd.f32 %v1162, %v1164
      %v1195 = vadd.f32 %v1163, %v1165
      %v1196 = vadd.f32 %v1164, %v1166
      %v1197 = vadd.f32 %v1165, %v1167
      %v1198 = vadd.f32 %v1166, %v1168
      %v1199 = vadd.f32 %v1167, %v1169
      %v1200 = vadd.f32 %v1168, %v1170
      %v1201 = vadd.f32 %v1169, %v1171
      %v1202 = vadd.f32 %v1170, %v1172
      %v1203 = vadd.f32 %v1171, %v1173
      %v1204 = vadd.f32 %v1172, %v1174
      %v1205 = vadd.f32 %v1173, %v1175
      %v1206 = vadd.f32 %v1174, %v1176
      %v1207 = vadd.f32 %v1175, %v1177
      %v1208 = vadd.f32 %v1176, %v1178
      %v1209 = vadd.f32 %v1177, %v1179
      %v1210 = vadd.f32 %v1178, %v1180
      %v1211 = vadd.f32 %v1179, %v1181
      %v1212 = vadd.f32 %v1180, %v1182
      %v1213 = vadd.f32 %v1181, %v1183
      %v1214 = vadd.f32 %v1182, %v1184
      %v1215 = vadd.f32 %v1183, %v1185
      %v1216 = vadd.f32 %v1184, %v1186
      %v1217 = vadd.f32 %v1185, %v1187
      %v1218 = vadd.f32 %v1186, %v1188
      %v1219 = vadd.f32 %v1187, %v1189
      %v1220 = vadd.f32 %v1188, %v1190
      %vm1251 = vcmask 1046528
      %v1252 = vrot.slane %v1159, 1
      %v1253 = vrot.slane %v1160, 1
      %v1254 = vsel %vm1251, %v1252, %v1253
      %v1255 = vrot.slane %v1161, 1
      %v1256 = vrot.slane %v1162, 1
      %v1257 = vsel %vm1251, %v1255, %v1256
      %v1258 = vrot.slane %v1163, 1
      %v1259 = vrot.slane %v1164, 1
      %v1260 = vsel %vm1251, %v1258, %v1259
      %v1261 = vrot.slane %v1165, 1
      %v1262 = vrot.slane %v1166, 1
      %v1263 = vsel %vm1251, %v1261, %v1262
      %v1264 = vrot.slane %v1167, 1
      %v1265 = vrot.slane %v1168, 1
      %v1266 = vsel %vm1251, %v1264, %v1265
      %v1267 = vrot.slane %v1169, 1
      %v1268 = vrot.slane %v1170, 1
      %v1269 = vsel %vm1251, %v1267, %v1268
      %v1270 = vrot.slane %v1171, 1
      %v1271 = vrot.slane %v1172, 1
      %v1272 = vsel %vm1251, %v1270, %v1271
      %v1273 = vrot.slane %v1173, 1
      %v1274 = vrot.slane %v1174, 1
      %v1275 = vsel %vm1251, %v1273, %v1274
      %v1276 = vrot.slane %v1175, 1
      %v1277 = vrot.slane %v1176, 1
      %v1278 = vsel %vm1251, %v1276, %v1277
      %v1279 = vrot.slane %v1177, 1
      %v1280 = vrot.slane %v1178, 1
      %v1281 = vsel %vm1251, %v1279, %v1280
      %v1282 = vrot.slane %v1179, 1
      %v1283 = vrot.slane %v1180, 1
      %v1284 = vsel %vm1251, %v1282, %v1283
      %v1285 = vrot.slane %v1181, 1
      %v1286 = vrot.slane %v1182, 1
      %v1287 = vsel %vm1251, %v1285, %v1286
      %v1288 = vrot.slane %v1183, 1
      %v1289 = vrot.slane %v1184, 1
      %v1290 = vsel %vm1251, %v1288, %v1289
      %v1291 = vrot.slane %v1185, 1
      %v1292 = vrot.slane %v1186, 1
      %v1293 = vsel %vm1251, %v1291, %v1292
      %v1294 = vrot.slane %v1187, 1
      %v1295 = vrot.slane %v1188, 1
      %v1296 = vsel %vm1251, %v1294, %v1295
      %v1327 = vadd.f32 %v1191, %v1254
      %v1328 = vadd.f32 %v1192, %v1253
      %v1329 = vadd.f32 %v1193, %v1257
      %v1330 = vadd.f32 %v1194, %v1256
      %v1331 = vadd.f32 %v1195, %v1260
      %v1332 = vadd.f32 %v1196, %v1259
      %v1333 = vadd.f32 %v1197, %v1263
      %v1334 = vadd.f32 %v1198, %v1262
      %v1335 = vadd.f32 %v1199, %v1266
      %v1336 = vadd.f32 %v1200, %v1265
      %v1337 = vadd.f32 %v1201, %v1269
      %v1338 = vadd.f32 %v1202, %v1268
      %v1339 = vadd.f32 %v1203, %v1272
      %v1340 = vadd.f32 %v1204, %v1271
      %v1341 = vadd.f32 %v1205, %v1275
      %v1342 = vadd.f32 %v1206, %v1274
      %v1343 = vadd.f32 %v1207, %v1278
      %v1344 = vadd.f32 %v1208, %v1277
      %v1345 = vadd.f32 %v1209, %v1281
      %v1346 = vadd.f32 %v1210, %v1280
      %v1347 = vadd.f32 %v1211, %v1284
      %v1348 = vadd.f32 %v1212, %v1283
      %v1349 = vadd.f32 %v1213, %v1287
      %v1350 = vadd.f32 %v1214, %v1286
      %v1351 = vadd.f32 %v1215, %v1290
      %v1352 = vadd.f32 %v1216, %v1289
      %v1353 = vadd.f32 %v1217, %v1293
      %v1354 = vadd.f32 %v1218, %v1292
      %v1355 = vadd.f32 %v1219, %v1296
      %v1356 = vadd.f32 %v1220, %v1295
      %v1359 = vrot.slane %v1189, 1
      %v1360 = vrot.slane %v1190, 1
      %v1361 = vsel %vm1251, %v1359, %v1360
      %v1364 = vadd.f32 %v1327, %v1257
      %v1365 = vadd.f32 %v1328, %v1256
      %v1366 = vadd.f32 %v1329, %v1260
      %v1367 = vadd.f32 %v1330, %v1259
      %v1368 = vadd.f32 %v1331, %v1263
      %v1369 = vadd.f32 %v1332, %v1262
      %v1370 = vadd.f32 %v1333, %v1266
      %v1371 = vadd.f32 %v1334, %v1265
      %v1372 = vadd.f32 %v1335, %v1269
      %v1373 = vadd.f32 %v1336, %v1268
      %v1374 = vadd.f32 %v1337, %v1272
      %v1375 = vadd.f32 %v1338, %v1271
      %v1376 = vadd.f32 %v1339, %v1275
      %v1377 = vadd.f32 %v1340, %v1274
      %v1378 = vadd.f32 %v1341, %v1278
      %v1379 = vadd.f32 %v1342, %v1277
      %v1380 = vadd.f32 %v1343, %v1281
      %v1381 = vadd.f32 %v1344, %v1280
      %v1382 = vadd.f32 %v1345, %v1284
      %v1383 = vadd.f32 %v1346, %v1283
      %v1384 = vadd.f32 %v1347, %v1287
      %v1385 = vadd.f32 %v1348, %v1286
      %v1386 = vadd.f32 %v1349, %v1290
      %v1387 = vadd.f32 %v1350, %v1289
      %v1388 = vadd.f32 %v1351, %v1293
      %v1389 = vadd.f32 %v1352, %v1292
      %v1390 = vadd.f32 %v1353, %v1296
      %v1391 = vadd.f32 %v1354, %v1295
      %v1392 = vadd.f32 %v1355, %v1361
      %v1393 = vadd.f32 %v1356, %v1360
      %v1394 = vmul.f32 %v1364, 0.25
      %v1395 = vmul.f32 %v1365, 0.25
      %v1396 = vmul.f32 %v1366, 0.25
      %v1397 = vmul.f32 %v1367, 0.25
      %v1398 = vmul.f32 %v1368, 0.25
      %v1399 = vmul.f32 %v1369, 0.25
      %v1400 = vmul.f32 %v1370, 0.25
      %v1401 = vmul.f32 %v1371, 0.25
      %v1402 = vmul.f32 %v1372, 0.25
      %v1403 = vmul.f32 %v1373, 0.25
      %v1404 = vmul.f32 %v1374, 0.25
      %v1405 = vmul.f32 %v1375, 0.25
      %v1406 = vmul.f32 %v1376, 0.25
      %v1407 = vmul.f32 %v1377, 0.25
      %v1408 = vmul.f32 %v1378, 0.25
      %v1409 = vmul.f32 %v1379, 0.25
      %v1410 = vmul.f32 %v1380, 0.25
      %v1411 = vmul.f32 %v1381, 0.25
      %v1412 = vmul.f32 %v1382, 0.25
      %v1413 = vmul.f32 %v1383, 0.25
      %v1414 = vmul.f32 %v1384, 0.25
      %v1415 = vmul.f32 %v1385, 0.25
      %v1416 = vmul.f32 %v1386, 0.25
      %v1417 = vmul.f32 %v1387, 0.25
      %v1418 = vmul.f32 %v1388, 0.25
      %v1419 = vmul.f32 %v1389, 0.25
      %v1420 = vmul.f32 %v1390, 0.25
      %v1421 = vmul.f32 %v1391, 0.25
      %v1422 = vmul.f32 %v1392, 0.25
      %v1423 = vmul.f32 %v1393, 0.25
      %1424 = vst [vmem:[%s197] sm:$0xff] %v1394
      %1425 = vst [vmem:[%s197 + $0x8] sm:$0x7f] %v1395
      %1426 = vst [vmem:[%s197 + $0x10] sm:$0xff] %v1396
      %1427 = vst [vmem:[%s197 + $0x18] sm:$0x7f] %v1397
      %1428 = vst [vmem:[%s197 + $0x20] sm:$0xff] %v1398
      %1429 = vst [vmem:[%s197 + $0x28] sm:$0x7f] %v1399
      %1430 = vst [vmem:[%s197 + $0x30] sm:$0xff] %v1400
      %1431 = vst [vmem:[%s197 + $0x38] sm:$0x7f] %v1401
      %1432 = vst [vmem:[%s197 + $0x40] sm:$0xff] %v1402
      %1433 = vst [vmem:[%s197 + $0x48] sm:$0x7f] %v1403
      %1434 = vst [vmem:[%s197 + $0x50] sm:$0xff] %v1404
      %1435 = vst [vmem:[%s197 + $0x58] sm:$0x7f] %v1405
      %1436 = vst [vmem:[%s197 + $0x60] sm:$0xff] %v1406
      %1437 = vst [vmem:[%s197 + $0x68] sm:$0x7f] %v1407
      %1438 = vst [vmem:[%s197 + $0x70] sm:$0xff] %v1408
      %1439 = vst [vmem:[%s197 + $0x78] sm:$0x7f] %v1409
      %1440 = vst [vmem:[%s197 + $0x80] sm:$0xff] %v1410
      %1441 = vst [vmem:[%s197 + $0x88] sm:$0x7f] %v1411
      %1442 = vst [vmem:[%s197 + $0x90] sm:$0xff] %v1412
      %1443 = vst [vmem:[%s197 + $0x98] sm:$0x7f] %v1413
      %1444 = vst [vmem:[%s197 + $0xa0] sm:$0xff] %v1414
      %1445 = vst [vmem:[%s197 + $0xa8] sm:$0x7f] %v1415
      %1446 = vst [vmem:[%s197 + $0xb0] sm:$0xff] %v1416
      %1447 = vst [vmem:[%s197 + $0xb8] sm:$0x7f] %v1417
      %1448 = vst [vmem:[%s197 + $0xc0] sm:$0xff] %v1418
      %1449 = vst [vmem:[%s197 + $0xc8] sm:$0x7f] %v1419
      %1450 = vst [vmem:[%s197 + $0xd0] sm:$0xff] %v1420
      %1451 = vst [vmem:[%s197 + $0xd8] sm:$0x7f] %v1421
      %1452 = vst [vmem:[%s197 + $0xe0] sm:$0xff] %v1422
      %1453 = vst [vmem:[%s197 + $0xe8] sm:$0x7f] %v1423
      %p1454 = scmp.lt.s32.totalorder %s15, 1
      %s1455 = scalar_select %p1454, %s15, 1
      %s1456 = smul.addr %s1455, 30
      %s1457 = smul.addr %s1456, 8
      %s1458 = scalar_lea.vmem %s4, %s1457
      // Predicated region
      $region37: #{block_forward.1} parent=35 // pred_check
        %p1459 = pneg %p122
      $region38: #{block_forward.1} parent=35 // pred_check_branch
        %1461 = sbr.rel (%p1459) target = $region40
      $region39: #{block_forward.1} parent=35 // pred_region
        _
      $region40: #{block_forward.1} parent=35 // pred_fallthru
        _
    $region36: #{block_forward.1} parent=5 // pred_fallthru
      _
    %p1462 = scmp.le.s32.totalorder 2, %s10
    // Predicated region
    $region41: #{block_forward.1} parent=5 // pred_check
      %p1463 = pneg %p1462
    $region42: #{block_forward.1} parent=5 // pred_check_branch
      %1465 = sbr.rel (%p1463) target = $region44
    $region43: #{block_forward.1} parent=5 // pred_region
      %s1466 = ssub.s32 %s10, 2
      // Predicated region
      $region45: #{block_forward.1} parent=43 // pred_check
        %p1467 = pneg %p128
      $region46: #{block_forward.1} parent=43 // pred_check_branch
        %1469 = sbr.rel (%p1467) target = $region48
      $region47: #{block_forward.1} parent=43 // pred_region
        %p1470 = scmp.lt.s32.totalorder %s16, 1
        %s1471 = scalar_select %p1470, %s16, 1
        %s1472 = smul.addr %s1471, 30
        %s1473 = smul.addr %s1472, 8
        %s1474 = scalar_lea.vmem %s4, %s1473
      $region48: #{block_forward.1} parent=43 // pred_fallthru
        _
    $region44: #{block_forward.1} parent=5 // pred_fallthru
      _
  $region6: #{block_forward.1} parent=0 // loop_footer
    %s14 = sadd.s32 1, %s10
  $region7: #{block_forward.1} parent=0 // loop_footer_branch
    %9 = sbr.rel target = $region3
  $region8: #{block_forward.1} parent=0 // loop_exit
    _

</llo_original>
